<compile_context>
chip_gen: v5e
topology: v5e:2x2
jax: 0.10.0
libtpu: 0.0.40
codegen_flags: <defaults>
</compile_context>

<pallas_src>
import math
from typing import Optional

import jax
import jax.numpy as jnp
from jax.experimental import pallas as pl
from jax.experimental.pallas import tpu as pltpu


# ---------------------------------------------------------------------------
# helpers
# ---------------------------------------------------------------------------

def _round_up(x: int, m: int) -> int:
    return ((x + m - 1) // m) * m


def _compute_hidden_dim(dim: int, hidden_dim: int, multiple_of: int,
                        ffn_dim_multiplier: Optional[float]) -> int:
    hidden_dim = int(2 * hidden_dim / 3)
    if ffn_dim_multiplier is not None:
        hidden_dim = int(ffn_dim_multiplier * hidden_dim)
    hidden_dim = multiple_of * ((hidden_dim + multiple_of - 1) // multiple_of)
    return hidden_dim


def _xavier_uniform(key, fan_out: int, fan_in: int, dtype=jnp.float32):
    # matches nn.init.xavier_uniform_ on a (fan_out, fan_in) weight
    bound = math.sqrt(6.0 / (fan_in + fan_out))
    return jax.random.uniform(key, (fan_out, fan_in), dtype=dtype,
                              minval=-bound, maxval=bound)


def _tpu_vmem_capacity_bytes() -> int:
    try:
        return int(pltpu.get_tpu_info().vmem_capacity_bytes)
    except Exception:
        return 128 << 20  # v5e/v6e default


def _tpu_generation() -> int:
    try:
        kind = jax.devices()[0].device_kind.lower()
    except Exception:
        return 6
    for g in (7, 6, 5, 4):
        if f"v{g}" in kind:
            return g
    return 6


def _choose_th(hidden: int, dim: int) -> int:
    """Hidden-dim tile: largest MXU-friendly divisor of hidden that keeps the
    double-buffered weight tiles (~12*dim*th bytes) a modest fraction of VMEM."""
    vmem = _tpu_vmem_capacity_bytes()
    gen = _tpu_generation()
    cap = 1024
    if gen >= 7 or vmem <= (64 << 20) or gen == 6:
        # v7x: 64 MiB VMEM; v6e: pair a large token tile with th=512.
        cap = 512
    if dim >= 8192:
        cap = min(cap, 256)
    while cap > 128 and 12 * dim * cap > int(0.45 * vmem):
        cap //= 2
    for th in (1024, 512, 256, 128):
        if th <= cap and hidden % th == 0:
            return th
    return hidden  # odd hidden: single full-width tile


def _choose_tm(M: int, dim: int, hidden: int, th: int, out_itemsize: int,
               user_tm: Optional[int] = None):
    """Pick a token tile (tm) and padded token count (m_pad)."""
    vmem = _tpu_vmem_capacity_bytes()
    gen = _tpu_generation()
    align = 256 if gen >= 6 else 128  # 2x256x256 MXU on v6e/v7x, 128x128 on v5e

    # Per-generation roofline knee (tokens needed per weight stream to be MXU-bound).
    if user_tm is not None:
        tm_target = user_tm
    elif gen >= 7:
        tm_target = 512
    elif gen == 6:
        tm_target = 1024
    else:
        tm_target = 512

    nk = max(1, hidden // th)
    # VMEM budget: double-buffered weight tiles + per-tm buffers (x/out double
    # buffers, f32 acc, f32 h/gated temporaries).
    weight_bytes = 12 * dim * th
    budget = int(0.8 * vmem) - weight_bytes
    per_tm = dim * (2 * 2 + 2 * out_itemsize + (4 if nk > 1 else 0)) + 16 * th
    tm_cap = align
    if budget > 0:
        tm_cap = max(align, (budget // per_tm) // align * align)
    tm_target = max(align, min(tm_target, tm_cap) // align * align)

    # v7x megacore: make sure the "parallel" token axis has >= 2 grid steps.
    if gen >= 7 and M >= 2 * align:
        tm_target = min(tm_target, _round_up((M + 1) // 2, align))

    tm = min(tm_target, _round_up(M, align))
    if M % tm == 0:
        return tm, M
    # Prefer an aligned tile that divides M exactly: no host-side pad copy.
    for cand in range(tm, align - 1, -align):
        if M % cand == 0:
            return cand, M
    # Small M: a single full-extent tile also avoids the pad (full dim is legal).
    if M <= tm_target:
        return M, M
    # Last resort: pad the token axis up to a tile multiple.
    return tm, _round_up(M, tm)


# ---------------------------------------------------------------------------
# kernels
# ---------------------------------------------------------------------------

def _ffn_kernel_acc(x_ref, w13_ref, w2t_ref, o_ref, acc_ref):
    """One (token-tile i, hidden-tile k) step of the SwiGLU FFN (nk > 1).

    x_ref:   (tm, dim)     bf16 activation tile   (same block for all k)
    w13_ref: (dim, 2*th)   bf16 fused [w1.T_k | w3.T_k] hidden slice
    w2t_ref: (th, dim)     bf16 w2.T hidden slice
    o_ref:   (tm, dim)     output tile (written on the last k)
    acc_ref: (tm, dim)     f32 accumulator scratch
    """
    k = pl.program_id(1)

    @pl.when(k == 0)
    def _():
        acc_ref[...] = jnp.zeros_like(acc_ref)

    th = w2t_ref.shape[0]
    # Single MXU pass over x for both w1 and w3 (fused weight), f32 accumulation.
    h = jnp.dot(x_ref[...], w13_ref[...], preferred_element_type=jnp.float32)
    h1 = h[:, :th]
    h3 = h[:, th:]
    # SiLU(h1) * h3 in f32; sigmoid goes down the EUP path.
    gated = (h1 * jax.nn.sigmoid(h1)) * h3
    acc_ref[...] += jnp.dot(gated.astype(w2t_ref.dtype), w2t_ref[...],
                            preferred_element_type=jnp.float32)

    @pl.when(k == pl.num_programs(1) - 1)
    def _():
        o_ref[...] = acc_ref[...].astype(o_ref.dtype)


def _ffn_kernel_single(x_ref, w13_ref, w2t_ref, o_ref):
    """nk == 1 fast path: no accumulator scratch, store directly to o_ref."""
    th = w2t_ref.shape[0]
    h = jnp.dot(x_ref[...], w13_ref[...], preferred_element_type=jnp.float32)
    h1 = h[:, :th]
    h3 = h[:, th:]
    gated = (h1 * jax.nn.sigmoid(h1)) * h3
    o_ref[...] = jnp.dot(gated.astype(w2t_ref.dtype), w2t_ref[...],
                         preferred_element_type=jnp.float32).astype(o_ref.dtype)


# ---------------------------------------------------------------------------
# wrapper
# ---------------------------------------------------------------------------

def feedforward_pallas(x, w13, w2t, *, hidden: int, th: int,
                       tm: Optional[int] = None,
                       out_dtype=None, compute_dtype=jnp.bfloat16):
    """x: (M, dim). w13: (dim, 2*hidden) interleaved per hidden tile th.
    w2t: (hidden, dim). Returns (M, dim) in out_dtype (default: x.dtype)."""
    M, dim = x.shape
    assert w13.shape == (dim, 2 * hidden)
    assert w2t.shape == (hidden, dim)
    assert hidden % th == 0
    out_dtype = out_dtype if out_dtype is not None else x.dtype

    in_bytes = jnp.dtype(compute_dtype).itemsize
    out_itemsize = jnp.dtype(out_dtype).itemsize

    tm_eff, m_pad = _choose_tm(M, dim, hidden, th, out_itemsize, user_tm=tm)
    nk = hidden // th
    nm = m_pad // tm_eff

    xc = x.astype(compute_dtype)
    if m_pad != M:
        xc = jnp.pad(xc, ((0, m_pad - M), (0, 0)))
    w13c = w13.astype(compute_dtype)
    w2tc = w2t.astype(compute_dtype)

    # Weights are re-streamed once per token tile (nm times); x/out read/written once.
    cost = pl.CostEstimate(
        flops=6 * m_pad * dim * hidden,                  # 2 * (M*d*2h + M*h*d)
        transcendentals=m_pad * hidden,                  # sigmoid
        bytes_accessed=(m_pad * dim * in_bytes
                        + nm * (w13.size + w2t.size) * in_bytes
                        + m_pad * dim * out_itemsize))

    # VMEM need: double-buffered streamed tiles + f32 accumulator + f32 temporaries.
    vmem_cap = _tpu_vmem_capacity_bytes()
    vmem_need = (2 * tm_eff * dim * in_bytes              # x tile (double-buffered)
                 + 2 * dim * (2 * th) * in_bytes          # fused w13 tile
                 + 2 * th * dim * in_bytes                # w2t tile
                 + 2 * tm_eff * dim * out_itemsize        # output tile
                 + (tm_eff * dim * 4 if nk > 1 else 0)    # f32 accumulator
                 + 16 * tm_eff * th)                      # f32 h / gated temporaries
    vmem_limit = int(min(max(int(1.25 * vmem_need), 16 << 20), int(0.9 * vmem_cap)))

    if nk == 1:
        y = pl.pallas_call(
            _ffn_kernel_single,
            out_shape=jax.ShapeDtypeStruct((m_pad, dim), out_dtype),
            grid_spec=pltpu.PrefetchScalarGridSpec(
                num_scalar_prefetch=0,
                grid=(nm,),
                in_specs=[
                    pl.BlockSpec((tm_eff, dim), lambda i: (i, 0)),   # x tile
                    pl.BlockSpec((dim, 2 * th), lambda i: (0, 0)),   # [w1t|w3t]
                    pl.BlockSpec((th, dim), lambda i: (0, 0)),       # w2t
                ],
                out_specs=pl.BlockSpec((tm_eff, dim), lambda i: (i, 0)),
            ),
            compiler_params=pltpu.CompilerParams(
                dimension_semantics=("parallel",),
                vmem_limit_bytes=vmem_limit),
            cost_estimate=cost,
        )(xc, w13c, w2tc)
    else:
        y = pl.pallas_call(
            _ffn_kernel_acc,
            out_shape=jax.ShapeDtypeStruct((m_pad, dim), out_dtype),
            grid_spec=pltpu.PrefetchScalarGridSpec(
                num_scalar_prefetch=0,
                grid=(nm, nk),
                in_specs=[
                    pl.BlockSpec((tm_eff, dim), lambda i, k: (i, 0)),   # x tile
                    pl.BlockSpec((dim, 2 * th), lambda i, k: (0, k)),   # [w1t|w3t]_k
                    pl.BlockSpec((th, dim), lambda i, k: (k, 0)),       # w2t_k
                ],
                out_specs=pl.BlockSpec((tm_eff, dim), lambda i, k: (i, 0)),
                scratch_shapes=[pltpu.VMEM((tm_eff, dim), jnp.float32)],
            ),
            compiler_params=pltpu.CompilerParams(
                dimension_semantics=("parallel", "arbitrary"),
                vmem_limit_bytes=vmem_limit),
            cost_estimate=cost,
        )(xc, w13c, w2tc)

    return y[:M] if m_pad != M else y


class FeedForwardPallas:
    """JAX/Pallas mirror of the PyTorch FeedForward module (bf16 params)."""

    def __init__(self, dim: int, hidden_dim: int, multiple_of: int,
                 ffn_dim_multiplier: Optional[float], key,
                 *, param_dtype=jnp.bfloat16, tm: Optional[int] = None,
                 th: Optional[int] = None):
        self.dim = dim
        self.hidden_dim = _compute_hidden_dim(dim, hidden_dim, multiple_of,
                                              ffn_dim_multiplier)
        self.tm = tm
        self.th = th if th is not None else _choose_th(self.hidden_dim, dim)

        k1, k2, k3 = jax.random.split(key, 3)
        # nn.Linear weights are (out_features, in_features); init in f32 then
        # transpose once into the kernel layout and cast to bf16.
        w1 = _xavier_uniform(k1, self.hidden_dim, dim)   # (hidden, dim)
        w2 = _xavier_uniform(k2, dim, self.hidden_dim)   # (dim, hidden)
        w3 = _xavier_uniform(k3, self.hidden_dim, dim)   # (hidden, dim)

        self.w1t = w1.T.astype(param_dtype)   # (dim, hidden)
        self.w3t = w3.T.astype(param_dtype)   # (dim, hidden)
        self.w2t = w2.T.astype(param_dtype)   # (hidden, dim)

        # Fuse + interleave per hidden tile so grid step k sees the contiguous
        # columns [w1.T[:, k*th:(k+1)*th] | w3.T[:, k*th:(k+1)*th]].
        nk = self.hidden_dim // self.th
        self.w13 = jnp.concatenate(
            [self.w1t.reshape(dim, nk, self.th),
             self.w3t.reshape(dim, nk, self.th)], axis=2
        ).reshape(dim, 2 * self.hidden_dim)

    def __call__(self, x):
        lead_shape = x.shape[:-1]
        x2d = x.reshape(-1, self.dim)
        y2d = feedforward_pallas(x2d, self.w13, self.w2t,
                                 hidden=self.hidden_dim, th=self.th, tm=self.tm,
                                 out_dtype=x.dtype)
        return y2d.reshape(*lead_shape, self.dim)


def _reference(x_bf16, w1t, w3t, w2t):
    """Pure-JAX reference mimicking the kernel's precision choices."""
    xf = x_bf16.astype(jnp.float32)
    h1 = xf @ w1t.astype(jnp.float32)
    h3 = xf @ w3t.astype(jnp.float32)
    g = (h1 * jax.nn.sigmoid(h1)) * h3
    g = g.astype(jnp.bfloat16).astype(jnp.float32)
    return g @ w2t.astype(jnp.float32)


if __name__ == "__main__":
    key = jax.random.PRNGKey(0)
    k_param, k_x = jax.random.split(key)

    # Small LLaMA-like config: dim=128, hidden arg=256, multiple_of=128
    #   -> effective hidden = 128 * ceil(int(2*256/3)/128) = 256
    dim, hidden_arg, multiple_of = 128, 256, 128
    batch, seq = 2, 64

    ffn = FeedForwardPallas(dim, hidden_arg, multiple_of,
                            ffn_dim_multiplier=None, key=k_param)

    x = jax.random.normal(k_x, (batch, seq, dim), dtype=jnp.float32)

    out = ffn(x)
    jax.block_until_ready(out)

    # correctness check against a pure-JAX reference (bf16 inputs, f32 math)
    x2d_bf16 = x.reshape(-1, dim).astype(jnp.bfloat16)
    ref = _reference(x2d_bf16, ffn.w1t, ffn.w3t, ffn.w2t).reshape(batch, seq, dim)

    assert out.shape == (batch, seq, dim)
    assert jnp.all(jnp.isfinite(out))
    assert jnp.allclose(out.astype(jnp.float32), ref, atol=2e-2, rtol=2e-2), \
        "mismatch vs reference"

    print("KERNEL_OK")
</pallas_src>

<mosaic_0001>
module attributes {stable_mosaic.version = 11 : i64} {
  func.func @_ffn_kernel_single(%arg0: i32, %arg1: memref<128x128xbf16, #tpu.memory_space<vmem>>, %arg2: memref<128x512xbf16, #tpu.memory_space<vmem>>, %arg3: memref<256x128xbf16, #tpu.memory_space<vmem>>, %arg4: memref<128x128xf32, #tpu.memory_space<vmem>>) attributes {dimension_semantics = [#tpu.dimension_semantics<parallel>], iteration_bounds = array<i64: 1>, scalar_prefetch = 0 : i64, scratch_operands = 0 : i64, tpu.core_type = #tpu.core_type<tc>, window_params = [{transform_indices = @transform_0, window_bounds = array<i64: 128, 128>}, {pipeline_mode = #tpu.pipeline_mode<synchronous>, transform_indices = @transform_1, window_bounds = array<i64: 128, 512>}, {pipeline_mode = #tpu.pipeline_mode<synchronous>, transform_indices = @transform_2, window_bounds = array<i64: 256, 128>}, {transform_indices = @transform_3, window_bounds = array<i64: 128, 128>}]} {
    %c0 = arith.constant 0 : index
    %c0_0 = arith.constant 0 : index
    %0 = vector.load %arg1[%c0, %c0_0] : memref<128x128xbf16, #tpu.memory_space<vmem>>, vector<128x128xbf16>
    %c0_1 = arith.constant 0 : index
    %c0_2 = arith.constant 0 : index
    %1 = vector.load %arg2[%c0_1, %c0_2] : memref<128x512xbf16, #tpu.memory_space<vmem>>, vector<128x512xbf16>
    %cst = arith.constant dense<0.000000e+00> : vector<128x512xf32>
    %2 = tpu.matmul %0, %1, %cst {dimension_numbers = #tpu.dot_dimension_numbers<[1], [0], [0], [1], [0, 0, 1, 1], [], []>} : vector<128x128xbf16>, vector<128x512xbf16>, vector<128x512xf32> -> vector<128x512xf32>
    %3 = vector.extract_strided_slice %2 {offsets = [0, 0], sizes = [128, 256], strides = [1, 1]} : vector<128x512xf32> to vector<128x256xf32>
    %4 = vector.extract_strided_slice %2 {offsets = [0, 256], sizes = [128, 256], strides = [1, 1]} : vector<128x512xf32> to vector<128x256xf32>
    %5 = arith.negf %3 : vector<128x256xf32>
    %6 = math.exp %5 : vector<128x256xf32>
    %cst_3 = arith.constant 1.000000e+00 : f32
    %7 = vector.broadcast %cst_3 : f32 to vector<128x256xf32>
    %8 = arith.addf %7, %6 : vector<128x256xf32>
    %9 = arith.divf %7, %8 : vector<128x256xf32>
    %10 = arith.mulf %3, %9 : vector<128x256xf32>
    %11 = arith.mulf %10, %4 : vector<128x256xf32>
    %12 = arith.truncf %11 : vector<128x256xf32> to vector<128x256xbf16>
    %c0_4 = arith.constant 0 : index
    %c0_5 = arith.constant 0 : index
    %13 = vector.load %arg3[%c0_4, %c0_5] : memref<256x128xbf16, #tpu.memory_space<vmem>>, vector<256x128xbf16>
    %cst_6 = arith.constant dense<0.000000e+00> : vector<128x128xf32>
    %14 = tpu.matmul %12, %13, %cst_6 {dimension_numbers = #tpu.dot_dimension_numbers<[1], [0], [0], [1], [0, 0, 1, 1], [], []>} : vector<128x256xbf16>, vector<256x128xbf16>, vector<128x128xf32> -> vector<128x128xf32>
    %c0_7 = arith.constant 0 : index
    %c0_8 = arith.constant 0 : index
    %15 = vector.load %arg4[%c0_7, %c0_8] : memref<128x128xf32, #tpu.memory_space<vmem>>, vector<128x128xf32>
    tpu.vector_store %arg4[%c0_7, %c0_8], %14 {strides = array<i32>} : memref<128x128xf32, #tpu.memory_space<vmem>>, vector<128x128xf32>,
    return
  }
  func.func @transform_0(%arg0: i32) -> (i32, i32) {
    %c0_i32 = arith.constant 0 : i32
    %c0_i32_0 = arith.constant 0 : i32
    return %arg0, %c0_i32 : i32, i32
  }
  func.func @transform_1(%arg0: i32) -> (i32, i32) {
    %c0_i32 = arith.constant 0 : i32
    %c0_i32_0 = arith.constant 0 : i32
    %c0_i32_1 = arith.constant 0 : i32
    return %c0_i32, %c0_i32_0 : i32, i32
  }
  func.func @transform_2(%arg0: i32) -> (i32, i32) {
    %c0_i32 = arith.constant 0 : i32
    %c0_i32_0 = arith.constant 0 : i32
    %c0_i32_1 = arith.constant 0 : i32
    return %c0_i32, %c0_i32_0 : i32, i32
  }
  func.func @transform_3(%arg0: i32) -> (i32, i32) {
    %c0_i32 = arith.constant 0 : i32
    %c0_i32_0 = arith.constant 0 : i32
    return %arg0, %c0_i32 : i32, i32
  }
}

</mosaic_0001>

<llo_original>
// kernel: tpu_custom_call.1
$region0: #{tpu_custom_call.1}
  #allocation0 [shape = 'u32[]', space=smem, size = 0x4, offset = 0x4, fixed_abs, tag = 'smem constant byte address 0x4 - core index']
  #allocation1 [shape = 'u32[72,128]{1,0:T(1,128)}', space=vmem, size = 0x9000, scoped, tag = 'internal scratch']
  %s0 = inlined_call_operand.hbm [shape: bf16[128,128], index: 0, kind: input, shape index: {}]
  %s1 = inlined_call_operand.hbm [shape: bf16[128,512], index: 1, kind: input, shape index: {}]
  %s2 = inlined_call_operand.hbm [shape: bf16[256,128], index: 2, kind: input, shape index: {}]
  %s3 = inlined_call_operand.hbm [shape: f32[128,128], index: 3, kind: output, shape index: {}]
  %s4 = sld [smem:[#allocation0]]
  $region34: #{tpu_custom_call.1} parent=0
    _
  %s6 = ssub.s32 1, %s4
  %s7 = scalar_select 0, %s6, %s4
  $region1: #{tpu_custom_call.1} parent=0
    #allocation2 [shape = 'u8[32768]{0}', space=vmem, size = 0x8000, scoped, tag = 'input window, operand 0, single buffered']
    #allocation3 [shape = 's32[1]{0}', space=sflag, size = 0x4, scoped, tag = 'scoped memory for tpu_custom_call.1']
    #allocation4 [shape = 's32[1]{0}', space=sflag, size = 0x4, scoped, tag = 'scoped memory for tpu_custom_call.1']
    #allocation5 [shape = 'u8[131072]{0}', space=vmem, size = 0x20000, scoped, tag = 'input window, operand 1, single buffered']
    #allocation6 [shape = 's32[1]{0}', space=sflag, size = 0x4, scoped, tag = 'scoped memory for tpu_custom_call.1']
    #allocation7 [shape = 'u8[65536]{0}', space=vmem, size = 0x10000, scoped, tag = 'input window, operand 2, single buffered']
    #allocation8 [shape = 'u8[65536]{0}', space=vmem, size = 0x10000, scoped, tag = 'output window, operand 0, single buffered']
    %8 = vsyncpa [#allocation3], 0
    %9 = vsyncpa [#allocation6], 0
    %10 = vsyncpa [#allocation4], 0
    // Predicated region
    $region2: #{tpu_custom_call.1} parent=1 // pred_check
      _
    $region3: #{tpu_custom_call.1} parent=1 // pred_check_branch
      %12 = sbr.rel (0) target = $region5
    $region4: #{tpu_custom_call.1} parent=1 // pred_region
      %14 = vsyncadd [#allocation3], 0
      %s15 = sshll.u32 %s0, 4
      %s16 = int_to_ptr.hbm [resolvable:$true] %s15
      %s17 = sshll.u32 [#allocation2], 4
      %s18 = int_to_ptr.vmem [resolvable:$true] %s17
      %23 = dma.hbm_to_vmem [thread:$0]  %s16, 1024, %s18, [#allocation3], 64, 64, 4
    $region5: #{tpu_custom_call.1} parent=1 // pred_fallthru
      _
    // Predicated region
    $region6: #{tpu_custom_call.1} parent=1 // pred_check
      _
    $region7: #{tpu_custom_call.1} parent=1 // pred_check_branch
      %25 = sbr.rel (0) target = $region9
    $region8: #{tpu_custom_call.1} parent=1 // pred_region
      %27 = vsyncadd [#allocation6], 0
      %s28 = sshll.u32 %s1, 4
      %s29 = int_to_ptr.hbm [resolvable:$true] %s28
      %s30 = sshll.u32 [#allocation5], 4
      %s31 = int_to_ptr.vmem [resolvable:$true] %s30
      %36 = dma.hbm_to_vmem [thread:$0]  %s29, 4096, %s31, [#allocation6], 256, 256, 16
    $region9: #{tpu_custom_call.1} parent=1 // pred_fallthru
      _
    // Predicated region
    $region10: #{tpu_custom_call.1} parent=1 // pred_check
      _
    $region11: #{tpu_custom_call.1} parent=1 // pred_check_branch
      %38 = sbr.rel (0) target = $region13
    $region12: #{tpu_custom_call.1} parent=1 // pred_region
      %40 = vsyncadd [#allocation6], 0
      %s41 = sshll.u32 %s2, 4
      %s42 = int_to_ptr.hbm [resolvable:$true] %s41
      %s43 = sshll.u32 [#allocation7], 4
      %s44 = int_to_ptr.vmem [resolvable:$true] %s43
      %49 = dma.hbm_to_vmem [thread:$0]  %s42, 2048, %s44, [#allocation6], 64, 64, 4
    $region13: #{tpu_custom_call.1} parent=1 // pred_fallthru
      _
    // Predicated region
    $region14: #{tpu_custom_call.1} parent=1 // pred_check
      _
    $region15: #{tpu_custom_call.1} parent=1 // pred_check_branch
      %51 = sbr.rel (0) target = $region17
    $region16: #{tpu_custom_call.1} parent=1 // pred_region
      %53 = dma.done [#allocation3], 1024
    $region17: #{tpu_custom_call.1} parent=1 // pred_fallthru
      _
    // Predicated region
    $region18: #{tpu_custom_call.1} parent=1 // pred_check
      _
    $region19: #{tpu_custom_call.1} parent=1 // pred_check_branch
      %55 = sbr.rel (0) target = $region21
    $region20: #{tpu_custom_call.1} parent=1 // pred_region
      %57 = dma.done [#allocation6], 4096
    $region21: #{tpu_custom_call.1} parent=1 // pred_fallthru
      _
    // Predicated region
    $region22: #{tpu_custom_call.1} parent=1 // pred_check
      _
    $region23: #{tpu_custom_call.1} parent=1 // pred_check_branch
      %59 = sbr.rel (0) target = $region25
    $region24: #{tpu_custom_call.1} parent=1 // pred_region
      %61 = dma.done [#allocation6], 2048
    $region25: #{tpu_custom_call.1} parent=1 // pred_fallthru
      _
    %v62 = vld [vmem:[#allocation2] sm:$0xf]
    %v63 = vld [vmem:[#allocation2 + $0x4] sm:$0xf]
    %v64 = vld [vmem:[#allocation2 + $0x8] sm:$0xf]
    %v65 = vld [vmem:[#allocation2 + $0xc] sm:$0xf]
    %v66 = vld [vmem:[#allocation2 + $0x10] sm:$0xf]
    %v67 = vld [vmem:[#allocation2 + $0x14] sm:$0xf]
    %v68 = vld [vmem:[#allocation2 + $0x18] sm:$0xf]
    %v69 = vld [vmem:[#allocation2 + $0x1c] sm:$0xf]
    %v70 = vld [vmem:[#allocation2 + $0x20] sm:$0xf]
    %v71 = vld [vmem:[#allocation2 + $0x24] sm:$0xf]
    %v72 = vld [vmem:[#allocation2 + $0x28] sm:$0xf]
    %v73 = vld [vmem:[#allocation2 + $0x2c] sm:$0xf]
    %v74 = vld [vmem:[#allocation2 + $0x30] sm:$0xf]
    %v75 = vld [vmem:[#allocation2 + $0x34] sm:$0xf]
    %v76 = vld [vmem:[#allocation2 + $0x38] sm:$0xf]
    %v77 = vld [vmem:[#allocation2 + $0x3c] sm:$0xf]
    %v78 = vld [vmem:[#allocation5] sm:$0xff]
    %v79 = vld [vmem:[#allocation5 + $0x8] sm:$0xff]
    %v80 = vld [vmem:[#allocation5 + $0x10] sm:$0xff]
    %v81 = vld [vmem:[#allocation5 + $0x18] sm:$0xff]
    %v82 = vld [vmem:[#allocation5 + $0x20] sm:$0xff]
    %v83 = vld [vmem:[#allocation5 + $0x28] sm:$0xff]
    %v84 = vld [vmem:[#allocation5 + $0x30] sm:$0xff]
    %v85 = vld [vmem:[#allocation5 + $0x38] sm:$0xff]
    %v86 = vld [vmem:[#allocation5 + $0x40] sm:$0xff]
    %v87 = vld [vmem:[#allocation5 + $0x48] sm:$0xff]
    %v88 = vld [vmem:[#allocation5 + $0x50] sm:$0xff]
    %v89 = vld [vmem:[#allocation5 + $0x58] sm:$0xff]
    %v90 = vld [vmem:[#allocation5 + $0x60] sm:$0xff]
    %v91 = vld [vmem:[#allocation5 + $0x68] sm:$0xff]
    %v92 = vld [vmem:[#allocation5 + $0x70] sm:$0xff]
    %v93 = vld [vmem:[#allocation5 + $0x78] sm:$0xff]
    %v94 = vld [vmem:[#allocation5 + $0x80] sm:$0xff]
    %v95 = vld [vmem:[#allocation5 + $0x88] sm:$0xff]
    %v96 = vld [vmem:[#allocation5 + $0x90] sm:$0xff]
    %v97 = vld [vmem:[#allocation5 + $0x98] sm:$0xff]
    %v98 = vld [vmem:[#allocation5 + $0xa0] sm:$0xff]
    %v99 = vld [vmem:[#allocation5 + $0xa8] sm:$0xff]
    %v100 = vld [vmem:[#allocation5 + $0xb0] sm:$0xff]
    %v101 = vld [vmem:[#allocation5 + $0xb8] sm:$0xff]
    %v102 = vld [vmem:[#allocation5 + $0xc0] sm:$0xff]
    %v103 = vld [vmem:[#allocation5 + $0xc8] sm:$0xff]
    %v104 = vld [vmem:[#allocation5 + $0xd0] sm:$0xff]
    %v105 = vld [vmem:[#allocation5 + $0xd8] sm:$0xff]
    %v106 = vld [vmem:[#allocation5 + $0xe0] sm:$0xff]
    %v107 = vld [vmem:[#allocation5 + $0xe8] sm:$0xff]
    %v108 = vld [vmem:[#allocation5 + $0xf0] sm:$0xff]
    %v109 = vld [vmem:[#allocation5 + $0xf8] sm:$0xff]
    %v126 = vunpack.c.l.b16 %v62
    %v127 = vunpack.c.l.b16 %v63
    %v128 = vunpack.c.l.b16 %v64
    %v129 = vunpack.c.l.b16 %v65
    %v130 = vunpack.c.l.b16 %v66
    %v131 = vunpack.c.l.b16 %v67
    %v132 = vunpack.c.l.b16 %v68
    %v133 = vunpack.c.l.b16 %v69
    %v134 = vunpack.c.l.b16 %v70
    %v135 = vunpack.c.l.b16 %v71
    %v136 = vunpack.c.l.b16 %v72
    %v137 = vunpack.c.l.b16 %v73
    %v138 = vunpack.c.l.b16 %v74
    %v139 = vunpack.c.l.b16 %v75
    %v140 = vunpack.c.l.b16 %v76
    %v141 = vunpack.c.l.b16 %v77
    %v142 = vpack.c.b16 %v127, %v126
    %v143 = vpack.c.b16 %v129, %v128
    %v144 = vpack.c.b16 %v131, %v130
    %v145 = vpack.c.b16 %v133, %v132
    %v146 = vpack.c.b16 %v135, %v134
    %v147 = vpack.c.b16 %v137, %v136
    %v148 = vpack.c.b16 %v139, %v138
    %v149 = vpack.c.b16 %v141, %v140
    %v190 = vunpack.c.l.b16 %v78
    %v191 = vunpack.c.h.b16 %v78
    %v192 = vunpack.c.l.b16 %v79
    %v193 = vunpack.c.h.b16 %v79
    %v194 = vunpack.c.l.b16 %v80
    %v195 = vunpack.c.h.b16 %v80
    %v196 = vunpack.c.l.b16 %v81
    %v197 = vunpack.c.h.b16 %v81
    %v198 = vunpack.c.l.b16 %v82
    %v199 = vunpack.c.h.b16 %v82
    %v200 = vunpack.c.l.b16 %v83
    %v201 = vunpack.c.h.b16 %v83
    %v202 = vunpack.c.l.b16 %v84
    %v203 = vunpack.c.h.b16 %v84
    %v204 = vunpack.c.l.b16 %v85
    %v205 = vunpack.c.h.b16 %v85
    %v206 = vunpack.c.l.b16 %v86
    %v207 = vunpack.c.h.b16 %v86
    %v208 = vunpack.c.l.b16 %v87
    %v209 = vunpack.c.h.b16 %v87
    %v210 = vunpack.c.l.b16 %v88
    %v211 = vunpack.c.h.b16 %v88
    %v212 = vunpack.c.l.b16 %v89
    %v213 = vunpack.c.h.b16 %v89
    %v214 = vunpack.c.l.b16 %v90
    %v215 = vunpack.c.h.b16 %v90
    %v216 = vunpack.c.l.b16 %v91
    %v217 = vunpack.c.h.b16 %v91
    %v218 = vunpack.c.l.b16 %v92
    %v219 = vunpack.c.h.b16 %v92
    %v220 = vunpack.c.l.b16 %v93
    %v221 = vunpack.c.h.b16 %v93
    %v222 = vunpack.c.l.b16 %v94
    %v223 = vunpack.c.h.b16 %v94
    %v224 = vunpack.c.l.b16 %v95
    %v225 = vunpack.c.h.b16 %v95
    %v226 = vunpack.c.l.b16 %v96
    %v227 = vunpack.c.h.b16 %v96
    %v228 = vunpack.c.l.b16 %v97
    %v229 = vunpack.c.h.b16 %v97
    %v230 = vunpack.c.l.b16 %v98
    %v231 = vunpack.c.h.b16 %v98
    %v232 = vunpack.c.l.b16 %v99
    %v233 = vunpack.c.h.b16 %v99
    %v234 = vunpack.c.l.b16 %v100
    %v235 = vunpack.c.h.b16 %v100
    %v236 = vunpack.c.l.b16 %v101
    %v237 = vunpack.c.h.b16 %v101
    %v238 = vunpack.c.l.b16 %v102
    %v239 = vunpack.c.h.b16 %v102
    %v240 = vunpack.c.l.b16 %v103
    %v241 = vunpack.c.h.b16 %v103
    %v242 = vunpack.c.l.b16 %v104
    %v243 = vunpack.c.h.b16 %v104
    %v244 = vunpack.c.l.b16 %v105
    %v245 = vunpack.c.h.b16 %v105
    %v246 = vunpack.c.l.b16 %v106
    %v247 = vunpack.c.h.b16 %v106
    %v248 = vunpack.c.l.b16 %v107
    %v249 = vunpack.c.h.b16 %v107
    %v250 = vunpack.c.l.b16 %v108
    %v251 = vunpack.c.h.b16 %v108
    %v252 = vunpack.c.l.b16 %v109
    %v253 = vunpack.c.h.b16 %v109
    %v254 = vpack.c.b16 %v194, %v190
    %v255 = vpack.c.b16 %v195, %v191
    %v256 = vpack.c.b16 %v196, %v192
    %v257 = vpack.c.b16 %v197, %v193
    %v258 = vpack.c.b16 %v202, %v198
    %v259 = vpack.c.b16 %v203, %v199
    %v260 = vpack.c.b16 %v204, %v200
    %v261 = vpack.c.b16 %v205, %v201
    %v262 = vpack.c.b16 %v210, %v206
    %v263 = vpack.c.b16 %v211, %v207
    %v264 = vpack.c.b16 %v212, %v208
    %v265 = vpack.c.b16 %v213, %v209
    %v266 = vpack.c.b16 %v218, %v214
    %v267 = vpack.c.b16 %v219, %v215
    %v268 = vpack.c.b16 %v220, %v216
    %v269 = vpack.c.b16 %v221, %v217
    %v270 = vpack.c.b16 %v226, %v222
    %v271 = vpack.c.b16 %v227, %v223
    %v272 = vpack.c.b16 %v228, %v224
    %v273 = vpack.c.b16 %v229, %v225
    %v274 = vpack.c.b16 %v234, %v230
    %v275 = vpack.c.b16 %v235, %v231
    %v276 = vpack.c.b16 %v236, %v232
    %v277 = vpack.c.b16 %v237, %v233
    %v278 = vpack.c.b16 %v242, %v238
    %v279 = vpack.c.b16 %v243, %v239
    %v280 = vpack.c.b16 %v244, %v240
    %v281 = vpack.c.b16 %v245, %v241
    %v282 = vpack.c.b16 %v250, %v246
    %v283 = vpack.c.b16 %v251, %v247
    %v284 = vpack.c.b16 %v252, %v248
    %v285 = vpack.c.b16 %v253, %v249
    %318 = vmatpush.bf16.msra.mxu0 %v282
    %319 = vmatpush.bf16.msra.mxu0 %v278
    %320 = vmatpush.bf16.msra.mxu0 %v274
    %321 = vmatpush.bf16.msra.mxu0 %v270
    %322 = vmatpush.bf16.msra.mxu0 %v266
    %323 = vmatpush.bf16.msra.mxu0 %v262
    %324 = vmatpush.bf16.msra.mxu0 %v258
    %325 = vmatpush.bf16.msra.mxu0 %v254
    %326 = vmatmul.bf16.gmra.mxu0 %v142
    %v327 = vpop.f32.mrf.mxu0
    %v328 = vadd.f32 0.0, %v327
    %v329 = vpop.f32.mrf.mxu0
    %v330 = vadd.f32 0.0, %v329
    %331 = vmatmul.bf16.gmra.mxu0 %v143
    %v332 = vpop.f32.mrf.mxu0
    %v333 = vadd.f32 0.0, %v332
    %v334 = vpop.f32.mrf.mxu0
    %v335 = vadd.f32 0.0, %v334
    %336 = vmatmul.bf16.gmra.mxu0 %v144
    %v337 = vpop.f32.mrf.mxu0
    %v338 = vadd.f32 0.0, %v337
    %v339 = vpop.f32.mrf.mxu0
    %v340 = vadd.f32 0.0, %v339
    %341 = vmatmul.bf16.gmra.mxu0 %v145
    %v342 = vpop.f32.mrf.mxu0
    %v343 = vadd.f32 0.0, %v342
    %v344 = vpop.f32.mrf.mxu0
    %v345 = vadd.f32 0.0, %v344
    %346 = vmatmul.bf16.gmra.mxu0 %v146
    %v347 = vpop.f32.mrf.mxu0
    %v348 = vadd.f32 0.0, %v347
    %v349 = vpop.f32.mrf.mxu0
    %v350 = vadd.f32 0.0, %v349
    %351 = vmatmul.bf16.gmra.mxu0 %v147
    %v352 = vpop.f32.mrf.mxu0
    %v353 = vadd.f32 0.0, %v352
    %v354 = vpop.f32.mrf.mxu0
    %v355 = vadd.f32 0.0, %v354
    %356 = vmatmul.bf16.gmra.mxu0 %v148
    %v357 = vpop.f32.mrf.mxu0
    %v358 = vadd.f32 0.0, %v357
    %v359 = vpop.f32.mrf.mxu0
    %v360 = vadd.f32 0.0, %v359
    %361 = vmatmul.bf16.gmra.mxu0 %v149
    %v362 = vpop.f32.mrf.mxu0
    %v363 = vadd.f32 0.0, %v362
    %v364 = vpop.f32.mrf.mxu0
    %v365 = vadd.f32 0.0, %v364
    %366 = vdwg.mxu0
    %367 = vmatpush.bf16.msra.mxu0 %v283
    %368 = vmatpush.bf16.msra.mxu0 %v279
    %369 = vmatpush.bf16.msra.mxu0 %v275
    %370 = vmatpush.bf16.msra.mxu0 %v271
    %371 = vmatpush.bf16.msra.mxu0 %v267
    %372 = vmatpush.bf16.msra.mxu0 %v263
    %373 = vmatpush.bf16.msra.mxu0 %v259
    %374 = vmatpush.bf16.msra.mxu0 %v255
    %375 = vmatmul.bf16.gmra.mxu0 %v142
    %v376 = vpop.f32.mrf.mxu0
    %v377 = vadd.f32 0.0, %v376
    %v378 = vpop.f32.mrf.mxu0
    %v379 = vadd.f32 0.0, %v378
    %380 = vmatmul.bf16.gmra.mxu0 %v143
    %v381 = vpop.f32.mrf.mxu0
    %v382 = vadd.f32 0.0, %v381
    %v383 = vpop.f32.mrf.mxu0
    %v384 = vadd.f32 0.0, %v383
    %385 = vmatmul.bf16.gmra.mxu0 %v144
    %v386 = vpop.f32.mrf.mxu0
    %v387 = vadd.f32 0.0, %v386
    %v388 = vpop.f32.mrf.mxu0
    %v389 = vadd.f32 0.0, %v388
    %390 = vmatmul.bf16.gmra.mxu0 %v145
    %v391 = vpop.f32.mrf.mxu0
    %v392 = vadd.f32 0.0, %v391
    %v393 = vpop.f32.mrf.mxu0
    %v394 = vadd.f32 0.0, %v393
    %395 = vmatmul.bf16.gmra.mxu0 %v146
    %v396 = vpop.f32.mrf.mxu0
    %v397 = vadd.f32 0.0, %v396
    %v398 = vpop.f32.mrf.mxu0
    %v399 = vadd.f32 0.0, %v398
    %400 = vmatmul.bf16.gmra.mxu0 %v147
    %v401 = vpop.f32.mrf.mxu0
    %v402 = vadd.f32 0.0, %v401
    %v403 = vpop.f32.mrf.mxu0
    %v404 = vadd.f32 0.0, %v403
    %405 = vmatmul.bf16.gmra.mxu0 %v148
    %v406 = vpop.f32.mrf.mxu0
    %v407 = vadd.f32 0.0, %v406
    %v408 = vpop.f32.mrf.mxu0
    %v409 = vadd.f32 0.0, %v408
    %410 = vmatmul.bf16.gmra.mxu0 %v149
    %v411 = vpop.f32.mrf.mxu0
    %v412 = vadd.f32 0.0, %v411
    %v413 = vpop.f32.mrf.mxu0
    %v414 = vadd.f32 0.0, %v413
    %415 = vdwg.mxu0
    %416 = vmatpush.bf16.msra.mxu0 %v284
    %417 = vmatpush.bf16.msra.mxu0 %v280
    %418 = vmatpush.bf16.msra.mxu0 %v276
    %419 = vmatpush.bf16.msra.mxu0 %v272
    %420 = vmatpush.bf16.msra.mxu0 %v268
    %421 = vmatpush.bf16.msra.mxu0 %v264
    %422 = vmatpush.bf16.msra.mxu0 %v260
    %423 = vmatpush.bf16.msra.mxu0 %v256
    %424 = vmatmul.bf16.gmra.mxu0 %v142
    %v425 = vpop.f32.mrf.mxu0
    %v426 = vadd.f32 0.0, %v425
    %v427 = vpop.f32.mrf.mxu0
    %v428 = vadd.f32 0.0, %v427
    %429 = vmatmul.bf16.gmra.mxu0 %v143
    %v430 = vpop.f32.mrf.mxu0
    %v431 = vadd.f32 0.0, %v430
    %v432 = vpop.f32.mrf.mxu0
    %v433 = vadd.f32 0.0, %v432
    %434 = vmatmul.bf16.gmra.mxu0 %v144
    %v435 = vpop.f32.mrf.mxu0
    %v436 = vadd.f32 0.0, %v435
    %v437 = vpop.f32.mrf.mxu0
    %v438 = vadd.f32 0.0, %v437
    %439 = vmatmul.bf16.gmra.mxu0 %v145
    %v440 = vpop.f32.mrf.mxu0
    %v441 = vadd.f32 0.0, %v440
    %v442 = vpop.f32.mrf.mxu0
    %v443 = vadd.f32 0.0, %v442
    %444 = vmatmul.bf16.gmra.mxu0 %v146
    %v445 = vpop.f32.mrf.mxu0
    %v446 = vadd.f32 0.0, %v445
    %v447 = vpop.f32.mrf.mxu0
    %v448 = vadd.f32 0.0, %v447
    %449 = vmatmul.bf16.gmra.mxu0 %v147
    %v450 = vpop.f32.mrf.mxu0
    %v451 = vadd.f32 0.0, %v450
    %v452 = vpop.f32.mrf.mxu0
    %v453 = vadd.f32 0.0, %v452
    %454 = vmatmul.bf16.gmra.mxu0 %v148
    %v455 = vpop.f32.mrf.mxu0
    %v456 = vadd.f32 0.0, %v455
    %v457 = vpop.f32.mrf.mxu0
    %v458 = vadd.f32 0.0, %v457
    %459 = vmatmul.bf16.gmra.mxu0 %v149
    %v460 = vpop.f32.mrf.mxu0
    %v461 = vadd.f32 0.0, %v460
    %v462 = vpop.f32.mrf.mxu0
    %v463 = vadd.f32 0.0, %v462
    %464 = vdwg.mxu0
    %465 = vmatpush.bf16.msra.mxu0 %v285
    %466 = vmatpush.bf16.msra.mxu0 %v281
    %467 = vmatpush.bf16.msra.mxu0 %v277
    %468 = vmatpush.bf16.msra.mxu0 %v273
    %469 = vmatpush.bf16.msra.mxu0 %v269
    %470 = vmatpush.bf16.msra.mxu0 %v265
    %471 = vmatpush.bf16.msra.mxu0 %v261
    %472 = vmatpush.bf16.msra.mxu0 %v257
    %473 = vmatmul.bf16.gmra.mxu0 %v142
    %v474 = vpop.f32.mrf.mxu0
    %v475 = vadd.f32 0.0, %v474
    %v476 = vpop.f32.mrf.mxu0
    %v477 = vadd.f32 0.0, %v476
    %478 = vmatmul.bf16.gmra.mxu0 %v143
    %v479 = vpop.f32.mrf.mxu0
    %v480 = vadd.f32 0.0, %v479
    %v481 = vpop.f32.mrf.mxu0
    %v482 = vadd.f32 0.0, %v481
    %483 = vmatmul.bf16.gmra.mxu0 %v144
    %v484 = vpop.f32.mrf.mxu0
    %v485 = vadd.f32 0.0, %v484
    %v486 = vpop.f32.mrf.mxu0
    %v487 = vadd.f32 0.0, %v486
    %488 = vmatmul.bf16.gmra.mxu0 %v145
    %v489 = vpop.f32.mrf.mxu0
    %v490 = vadd.f32 0.0, %v489
    %v491 = vpop.f32.mrf.mxu0
    %v492 = vadd.f32 0.0, %v491
    %493 = vmatmul.bf16.gmra.mxu0 %v146
    %v494 = vpop.f32.mrf.mxu0
    %v495 = vadd.f32 0.0, %v494
    %v496 = vpop.f32.mrf.mxu0
    %v497 = vadd.f32 0.0, %v496
    %498 = vmatmul.bf16.gmra.mxu0 %v147
    %v499 = vpop.f32.mrf.mxu0
    %v500 = vadd.f32 0.0, %v499
    %v501 = vpop.f32.mrf.mxu0
    %v502 = vadd.f32 0.0, %v501
    %503 = vmatmul.bf16.gmra.mxu0 %v148
    %v504 = vpop.f32.mrf.mxu0
    %v505 = vadd.f32 0.0, %v504
    %v506 = vpop.f32.mrf.mxu0
    %v507 = vadd.f32 0.0, %v506
    %508 = vmatmul.bf16.gmra.mxu0 %v149
    %v509 = vpop.f32.mrf.mxu0
    %v510 = vadd.f32 0.0, %v509
    %v511 = vpop.f32.mrf.mxu0
    %v512 = vadd.f32 0.0, %v511
    %513 = vdwg.mxu0
    %v514 = vxor.u32 %v328, 2147483648
    %v515 = vxor.u32 %v377, 2147483648
    %v516 = vxor.u32 %v330, 2147483648
    %v517 = vxor.u32 %v379, 2147483648
    %v518 = vxor.u32 %v333, 2147483648
    %v519 = vxor.u32 %v382, 2147483648
    %v520 = vxor.u32 %v335, 2147483648
    %v521 = vxor.u32 %v384, 2147483648
    %v522 = vxor.u32 %v338, 2147483648
    %v523 = vxor.u32 %v387, 2147483648
    %v524 = vxor.u32 %v340, 2147483648
    %v525 = vxor.u32 %v389, 2147483648
    %v526 = vxor.u32 %v343, 2147483648
    %v527 = vxor.u32 %v392, 2147483648
    %v528 = vxor.u32 %v345, 2147483648
    %v529 = vxor.u32 %v394, 2147483648
    %v530 = vxor.u32 %v348, 2147483648
    %v531 = vxor.u32 %v397, 2147483648
    %v532 = vxor.u32 %v350, 2147483648
    %v533 = vxor.u32 %v399, 2147483648
    %v534 = vxor.u32 %v353, 2147483648
    %v535 = vxor.u32 %v402, 2147483648
    %v536 = vxor.u32 %v355, 2147483648
    %v537 = vxor.u32 %v404, 2147483648
    %v538 = vxor.u32 %v358, 2147483648
    %v539 = vxor.u32 %v407, 2147483648
    %v540 = vxor.u32 %v360, 2147483648
    %v541 = vxor.u32 %v409, 2147483648
    %v542 = vxor.u32 %v363, 2147483648
    %v543 = vxor.u32 %v412, 2147483648
    %v544 = vxor.u32 %v365, 2147483648
    %v545 = vxor.u32 %v414, 2147483648
    %v546 = vmul.f32 %v514, 1.442695
    %v547 = vpow.pop %v546
    %v548 = vmul.f32 %v515, 1.442695
    %v549 = vpow.pop %v548
    %v550 = vmul.f32 %v516, 1.442695
    %v551 = vpow.pop %v550
    %v552 = vmul.f32 %v517, 1.442695
    %v553 = vpow.pop %v552
    %v554 = vmul.f32 %v518, 1.442695
    %v555 = vpow.pop %v554
    %v556 = vmul.f32 %v519, 1.442695
    %v557 = vpow.pop %v556
    %v558 = vmul.f32 %v520, 1.442695
    %v559 = vpow.pop %v558
    %v560 = vmul.f32 %v521, 1.442695
    %v561 = vpow.pop %v560
    %v562 = vmul.f32 %v522, 1.442695
    %v563 = vpow.pop %v562
    %v564 = vmul.f32 %v523, 1.442695
    %v565 = vpow.pop %v564
    %v566 = vmul.f32 %v524, 1.442695
    %v567 = vpow.pop %v566
    %v568 = vmul.f32 %v525, 1.442695
    %v569 = vpow.pop %v568
    %v570 = vmul.f32 %v526, 1.442695
    %v571 = vpow.pop %v570
    %v572 = vmul.f32 %v527, 1.442695
    %v573 = vpow.pop %v572
    %v574 = vmul.f32 %v528, 1.442695
    %v575 = vpow.pop %v574
    %v576 = vmul.f32 %v529, 1.442695
    %v577 = vpow.pop %v576
    %v578 = vmul.f32 %v530, 1.442695
    %v579 = vpow.pop %v578
    %v580 = vmul.f32 %v531, 1.442695
    %v581 = vpow.pop %v580
    %v582 = vmul.f32 %v532, 1.442695
    %v583 = vpow.pop %v582
    %v584 = vmul.f32 %v533, 1.442695
    %v585 = vpow.pop %v584
    %v586 = vmul.f32 %v534, 1.442695
    %v587 = vpow.pop %v586
    %v588 = vmul.f32 %v535, 1.442695
    %v589 = vpow.pop %v588
    %v590 = vmul.f32 %v536, 1.442695
    %v591 = vpow.pop %v590
    %v592 = vmul.f32 %v537, 1.442695
    %v593 = vpow.pop %v592
    %v594 = vmul.f32 %v538, 1.442695
    %v595 = vpow.pop %v594
    %v596 = vmul.f32 %v539, 1.442695
    %v597 = vpow.pop %v596
    %v598 = vmul.f32 %v540, 1.442695
    %v599 = vpow.pop %v598
    %v600 = vmul.f32 %v541, 1.442695
    %v601 = vpow.pop %v600
    %v602 = vmul.f32 %v542, 1.442695
    %v603 = vpow.pop %v602
    %v604 = vmul.f32 %v543, 1.442695
    %v605 = vpow.pop %v604
    %v606 = vmul.f32 %v544, 1.442695
    %v607 = vpow.pop %v606
    %v608 = vmul.f32 %v545, 1.442695
    %v609 = vpow.pop %v608
    %v610 = vadd.f32 %v547, 1.0
    %v611 = vadd.f32 %v549, 1.0
    %v612 = vadd.f32 %v551, 1.0
    %v613 = vadd.f32 %v553, 1.0
    %v614 = vadd.f32 %v555, 1.0
    %v615 = vadd.f32 %v557, 1.0
    %v616 = vadd.f32 %v559, 1.0
    %v617 = vadd.f32 %v561, 1.0
    %v618 = vadd.f32 %v563, 1.0
    %v619 = vadd.f32 %v565, 1.0
    %v620 = vadd.f32 %v567, 1.0
    %v621 = vadd.f32 %v569, 1.0
    %v622 = vadd.f32 %v571, 1.0
    %v623 = vadd.f32 %v573, 1.0
    %v624 = vadd.f32 %v575, 1.0
    %v625 = vadd.f32 %v577, 1.0
    %v626 = vadd.f32 %v579, 1.0
    %v627 = vadd.f32 %v581, 1.0
    %v628 = vadd.f32 %v583, 1.0
    %v629 = vadd.f32 %v585, 1.0
    %v630 = vadd.f32 %v587, 1.0
    %v631 = vadd.f32 %v589, 1.0
    %v632 = vadd.f32 %v591, 1.0
    %v633 = vadd.f32 %v593, 1.0
    %v634 = vadd.f32 %v595, 1.0
    %v635 = vadd.f32 %v597, 1.0
    %v636 = vadd.f32 %v599, 1.0
    %v637 = vadd.f32 %v601, 1.0
    %v638 = vadd.f32 %v603, 1.0
    %v639 = vadd.f32 %v605, 1.0
    %v640 = vadd.f32 %v607, 1.0
    %v641 = vadd.f32 %v609, 1.0
    %v642 = vrcp.pop %v610
    %v643 = vmul.f32 %v610, %v642
    %v644 = vsub.f32 1.0, %v643
    %v645 = vmul.f32 %v642, %v644
    %v646 = vadd.f32 %v642, %v645
    %vm647 = vweird.f32 %v610
    %vm648 = vweird.f32 %v642
    %vm649 = vmor %vm647, %vm648
    %v650 = vsel %vm649, %v642, %v646
    %v651 = vand.u32 2147483647, %v610
    %vm652 = vcmp.eq.f32.partialorder %v651, 8.507059e+37
    %v653 = vand.u32 %v610, 2147483648
    %v654 = vor.u32 1.1754944e-38, %v653
    %v655 = vsel %vm652, %v654, %v650
    %v656 = vmul.f32 1.0, %v655
    %v657 = vrcp.pop %v611
    %v658 = vmul.f32 %v611, %v657
    %v659 = vsub.f32 1.0, %v658
    %v660 = vmul.f32 %v657, %v659
    %v661 = vadd.f32 %v657, %v660
    %vm662 = vweird.f32 %v611
    %vm663 = vweird.f32 %v657
    %vm664 = vmor %vm662, %vm663
    %v665 = vsel %vm664, %v657, %v661
    %v666 = vand.u32 2147483647, %v611
    %vm667 = vcmp.eq.f32.partialorder %v666, 8.507059e+37
    %v668 = vand.u32 %v611, 2147483648
    %v669 = vor.u32 1.1754944e-38, %v668
    %v670 = vsel %vm667, %v669, %v665
    %v671 = vmul.f32 1.0, %v670
    %v672 = vrcp.pop %v612
    %v673 = vmul.f32 %v612, %v672
    %v674 = vsub.f32 1.0, %v673
    %v675 = vmul.f32 %v672, %v674
    %v676 = vadd.f32 %v672, %v675
    %vm677 = vweird.f32 %v612
    %vm678 = vweird.f32 %v672
    %vm679 = vmor %vm677, %vm678
    %v680 = vsel %vm679, %v672, %v676
    %v681 = vand.u32 2147483647, %v612
    %vm682 = vcmp.eq.f32.partialorder %v681, 8.507059e+37
    %v683 = vand.u32 %v612, 2147483648
    %v684 = vor.u32 1.1754944e-38, %v683
    %v685 = vsel %vm682, %v684, %v680
    %v686 = vmul.f32 1.0, %v685
    %v687 = vrcp.pop %v613
    %v688 = vmul.f32 %v613, %v687
    %v689 = vsub.f32 1.0, %v688
    %v690 = vmul.f32 %v687, %v689
    %v691 = vadd.f32 %v687, %v690
    %vm692 = vweird.f32 %v613
    %vm693 = vweird.f32 %v687
    %vm694 = vmor %vm692, %vm693
    %v695 = vsel %vm694, %v687, %v691
    %v696 = vand.u32 2147483647, %v613
    %vm697 = vcmp.eq.f32.partialorder %v696, 8.507059e+37
    %v698 = vand.u32 %v613, 2147483648
    %v699 = vor.u32 1.1754944e-38, %v698
    %v700 = vsel %vm697, %v699, %v695
    %v701 = vmul.f32 1.0, %v700
    %v702 = vrcp.pop %v614
    %v703 = vmul.f32 %v614, %v702
    %v704 = vsub.f32 1.0, %v703
    %v705 = vmul.f32 %v702, %v704
    %v706 = vadd.f32 %v702, %v705
    %vm707 = vweird.f32 %v614
    %vm708 = vweird.f32 %v702
    %vm709 = vmor %vm707, %vm708
    %v710 = vsel %vm709, %v702, %v706
    %v711 = vand.u32 2147483647, %v614
    %vm712 = vcmp.eq.f32.partialorder %v711, 8.507059e+37
    %v713 = vand.u32 %v614, 2147483648
    %v714 = vor.u32 1.1754944e-38, %v713
    %v715 = vsel %vm712, %v714, %v710
    %v716 = vmul.f32 1.0, %v715
    %v717 = vrcp.pop %v615
    %v718 = vmul.f32 %v615, %v717
    %v719 = vsub.f32 1.0, %v718
    %v720 = vmul.f32 %v717, %v719
    %v721 = vadd.f32 %v717, %v720
    %vm722 = vweird.f32 %v615
    %vm723 = vweird.f32 %v717
    %vm724 = vmor %vm722, %vm723
    %v725 = vsel %vm724, %v717, %v721
    %v726 = vand.u32 2147483647, %v615
    %vm727 = vcmp.eq.f32.partialorder %v726, 8.507059e+37
    %v728 = vand.u32 %v615, 2147483648
    %v729 = vor.u32 1.1754944e-38, %v728
    %v730 = vsel %vm727, %v729, %v725
    %v731 = vmul.f32 1.0, %v730
    %v732 = vrcp.pop %v616
    %v733 = vmul.f32 %v616, %v732
    %v734 = vsub.f32 1.0, %v733
    %v735 = vmul.f32 %v732, %v734
    %v736 = vadd.f32 %v732, %v735
    %vm737 = vweird.f32 %v616
    %vm738 = vweird.f32 %v732
    %vm739 = vmor %vm737, %vm738
    %v740 = vsel %vm739, %v732, %v736
    %v741 = vand.u32 2147483647, %v616
    %vm742 = vcmp.eq.f32.partialorder %v741, 8.507059e+37
    %v743 = vand.u32 %v616, 2147483648
    %v744 = vor.u32 1.1754944e-38, %v743
    %v745 = vsel %vm742, %v744, %v740
    %v746 = vmul.f32 1.0, %v745
    %v747 = vrcp.pop %v617
    %v748 = vmul.f32 %v617, %v747
    %v749 = vsub.f32 1.0, %v748
    %v750 = vmul.f32 %v747, %v749
    %v751 = vadd.f32 %v747, %v750
    %vm752 = vweird.f32 %v617
    %vm753 = vweird.f32 %v747
    %vm754 = vmor %vm752, %vm753
    %v755 = vsel %vm754, %v747, %v751
    %v756 = vand.u32 2147483647, %v617
    %vm757 = vcmp.eq.f32.partialorder %v756, 8.507059e+37
    %v758 = vand.u32 %v617, 2147483648
    %v759 = vor.u32 1.1754944e-38, %v758
    %v760 = vsel %vm757, %v759, %v755
    %v761 = vmul.f32 1.0, %v760
    %v762 = vrcp.pop %v618
    %v763 = vmul.f32 %v618, %v762
    %v764 = vsub.f32 1.0, %v763
    %v765 = vmul.f32 %v762, %v764
    %v766 = vadd.f32 %v762, %v765
    %vm767 = vweird.f32 %v618
    %vm768 = vweird.f32 %v762
    %vm769 = vmor %vm767, %vm768
    %v770 = vsel %vm769, %v762, %v766
    %v771 = vand.u32 2147483647, %v618
    %vm772 = vcmp.eq.f32.partialorder %v771, 8.507059e+37
    %v773 = vand.u32 %v618, 2147483648
    %v774 = vor.u32 1.1754944e-38, %v773
    %v775 = vsel %vm772, %v774, %v770
    %v776 = vmul.f32 1.0, %v775
    %v777 = vrcp.pop %v619
    %v778 = vmul.f32 %v619, %v777
    %v779 = vsub.f32 1.0, %v778
    %v780 = vmul.f32 %v777, %v779
    %v781 = vadd.f32 %v777, %v780
    %vm782 = vweird.f32 %v619
    %vm783 = vweird.f32 %v777
    %vm784 = vmor %vm782, %vm783
    %v785 = vsel %vm784, %v777, %v781
    %v786 = vand.u32 2147483647, %v619
    %vm787 = vcmp.eq.f32.partialorder %v786, 8.507059e+37
    %v788 = vand.u32 %v619, 2147483648
    %v789 = vor.u32 1.1754944e-38, %v788
    %v790 = vsel %vm787, %v789, %v785
    %v791 = vmul.f32 1.0, %v790
    %v792 = vrcp.pop %v620
    %v793 = vmul.f32 %v620, %v792
    %v794 = vsub.f32 1.0, %v793
    %v795 = vmul.f32 %v792, %v794
    %v796 = vadd.f32 %v792, %v795
    %vm797 = vweird.f32 %v620
    %vm798 = vweird.f32 %v792
    %vm799 = vmor %vm797, %vm798
    %v800 = vsel %vm799, %v792, %v796
    %v801 = vand.u32 2147483647, %v620
    %vm802 = vcmp.eq.f32.partialorder %v801, 8.507059e+37
    %v803 = vand.u32 %v620, 2147483648
    %v804 = vor.u32 1.1754944e-38, %v803
    %v805 = vsel %vm802, %v804, %v800
    %v806 = vmul.f32 1.0, %v805
    %v807 = vrcp.pop %v621
    %v808 = vmul.f32 %v621, %v807
    %v809 = vsub.f32 1.0, %v808
    %v810 = vmul.f32 %v807, %v809
    %v811 = vadd.f32 %v807, %v810
    %vm812 = vweird.f32 %v621
    %vm813 = vweird.f32 %v807
    %vm814 = vmor %vm812, %vm813
    %v815 = vsel %vm814, %v807, %v811
    %v816 = vand.u32 2147483647, %v621
    %vm817 = vcmp.eq.f32.partialorder %v816, 8.507059e+37
    %v818 = vand.u32 %v621, 2147483648
    %v819 = vor.u32 1.1754944e-38, %v818
    %v820 = vsel %vm817, %v819, %v815
    %v821 = vmul.f32 1.0, %v820
    %v822 = vrcp.pop %v622
    %v823 = vmul.f32 %v622, %v822
    %v824 = vsub.f32 1.0, %v823
    %v825 = vmul.f32 %v822, %v824
    %v826 = vadd.f32 %v822, %v825
    %vm827 = vweird.f32 %v622
    %vm828 = vweird.f32 %v822
    %vm829 = vmor %vm827, %vm828
    %v830 = vsel %vm829, %v822, %v826
    %v831 = vand.u32 2147483647, %v622
    %vm832 = vcmp.eq.f32.partialorder %v831, 8.507059e+37
    %v833 = vand.u32 %v622, 2147483648
    %v834 = vor.u32 1.1754944e-38, %v833
    %v835 = vsel %vm832, %v834, %v830
    %v836 = vmul.f32 1.0, %v835
    %v837 = vrcp.pop %v623
    %v838 = vmul.f32 %v623, %v837
    %v839 = vsub.f32 1.0, %v838
    %v840 = vmul.f32 %v837, %v839
    %v841 = vadd.f32 %v837, %v840
    %vm842 = vweird.f32 %v623
    %vm843 = vweird.f32 %v837
    %vm844 = vmor %vm842, %vm843
    %v845 = vsel %vm844, %v837, %v841
    %v846 = vand.u32 2147483647, %v623
    %vm847 = vcmp.eq.f32.partialorder %v846, 8.507059e+37
    %v848 = vand.u32 %v623, 2147483648
    %v849 = vor.u32 1.1754944e-38, %v848
    %v850 = vsel %vm847, %v849, %v845
    %v851 = vmul.f32 1.0, %v850
    %v852 = vrcp.pop %v624
    %v853 = vmul.f32 %v624, %v852
    %v854 = vsub.f32 1.0, %v853
    %v855 = vmul.f32 %v852, %v854
    %v856 = vadd.f32 %v852, %v855
    %vm857 = vweird.f32 %v624
    %vm858 = vweird.f32 %v852
    %vm859 = vmor %vm857, %vm858
    %v860 = vsel %vm859, %v852, %v856
    %v861 = vand.u32 2147483647, %v624
    %vm862 = vcmp.eq.f32.partialorder %v861, 8.507059e+37
    %v863 = vand.u32 %v624, 2147483648
    %v864 = vor.u32 1.1754944e-38, %v863
    %v865 = vsel %vm862, %v864, %v860
    %v866 = vmul.f32 1.0, %v865
    %v867 = vrcp.pop %v625
    %v868 = vmul.f32 %v625, %v867
    %v869 = vsub.f32 1.0, %v868
    %v870 = vmul.f32 %v867, %v869
    %v871 = vadd.f32 %v867, %v870
    %vm872 = vweird.f32 %v625
    %vm873 = vweird.f32 %v867
    %vm874 = vmor %vm872, %vm873
    %v875 = vsel %vm874, %v867, %v871
    %v876 = vand.u32 2147483647, %v625
    %vm877 = vcmp.eq.f32.partialorder %v876, 8.507059e+37
    %v878 = vand.u32 %v625, 2147483648
    %v879 = vor.u32 1.1754944e-38, %v878
    %v880 = vsel %vm877, %v879, %v875
    %v881 = vmul.f32 1.0, %v880
    %v882 = vrcp.pop %v626
    %v883 = vmul.f32 %v626, %v882
    %v884 = vsub.f32 1.0, %v883
    %v885 = vmul.f32 %v882, %v884
    %v886 = vadd.f32 %v882, %v885
    %vm887 = vweird.f32 %v626
    %vm888 = vweird.f32 %v882
    %vm889 = vmor %vm887, %vm888
    %v890 = vsel %vm889, %v882, %v886
    %v891 = vand.u32 2147483647, %v626
    %vm892 = vcmp.eq.f32.partialorder %v891, 8.507059e+37
    %v893 = vand.u32 %v626, 2147483648
    %v894 = vor.u32 1.1754944e-38, %v893
    %v895 = vsel %vm892, %v894, %v890
    %v896 = vmul.f32 1.0, %v895
    %v897 = vrcp.pop %v627
    %v898 = vmul.f32 %v627, %v897
    %v899 = vsub.f32 1.0, %v898
    %v900 = vmul.f32 %v897, %v899
    %v901 = vadd.f32 %v897, %v900
    %vm902 = vweird.f32 %v627
    %vm903 = vweird.f32 %v897
    %vm904 = vmor %vm902, %vm903
    %v905 = vsel %vm904, %v897, %v901
    %v906 = vand.u32 2147483647, %v627
    %vm907 = vcmp.eq.f32.partialorder %v906, 8.507059e+37
    %v908 = vand.u32 %v627, 2147483648
    %v909 = vor.u32 1.1754944e-38, %v908
    %v910 = vsel %vm907, %v909, %v905
    %v911 = vmul.f32 1.0, %v910
    %v912 = vrcp.pop %v628
    %v913 = vmul.f32 %v628, %v912
    %v914 = vsub.f32 1.0, %v913
    %v915 = vmul.f32 %v912, %v914
    %v916 = vadd.f32 %v912, %v915
    %vm917 = vweird.f32 %v628
    %vm918 = vweird.f32 %v912
    %vm919 = vmor %vm917, %vm918
    %v920 = vsel %vm919, %v912, %v916
    %v921 = vand.u32 2147483647, %v628
    %vm922 = vcmp.eq.f32.partialorder %v921, 8.507059e+37
    %v923 = vand.u32 %v628, 2147483648
    %v924 = vor.u32 1.1754944e-38, %v923
    %v925 = vsel %vm922, %v924, %v920
    %v926 = vmul.f32 1.0, %v925
    %v927 = vrcp.pop %v629
    %v928 = vmul.f32 %v629, %v927
    %v929 = vsub.f32 1.0, %v928
    %v930 = vmul.f32 %v927, %v929
    %v931 = vadd.f32 %v927, %v930
    %vm932 = vweird.f32 %v629
    %vm933 = vweird.f32 %v927
    %vm934 = vmor %vm932, %vm933
    %v935 = vsel %vm934, %v927, %v931
    %v936 = vand.u32 2147483647, %v629
    %vm937 = vcmp.eq.f32.partialorder %v936, 8.507059e+37
    %v938 = vand.u32 %v629, 2147483648
    %v939 = vor.u32 1.1754944e-38, %v938
    %v940 = vsel %vm937, %v939, %v935
    %v941 = vmul.f32 1.0, %v940
    %v942 = vrcp.pop %v630
    %v943 = vmul.f32 %v630, %v942
    %v944 = vsub.f32 1.0, %v943
    %v945 = vmul.f32 %v942, %v944
    %v946 = vadd.f32 %v942, %v945
    %vm947 = vweird.f32 %v630
    %vm948 = vweird.f32 %v942
    %vm949 = vmor %vm947, %vm948
    %v950 = vsel %vm949, %v942, %v946
    %v951 = vand.u32 2147483647, %v630
    %vm952 = vcmp.eq.f32.partialorder %v951, 8.507059e+37
    %v953 = vand.u32 %v630, 2147483648
    %v954 = vor.u32 1.1754944e-38, %v953
    %v955 = vsel %vm952, %v954, %v950
    %v956 = vmul.f32 1.0, %v955
    %v957 = vrcp.pop %v631
    %v958 = vmul.f32 %v631, %v957
    %v959 = vsub.f32 1.0, %v958
    %v960 = vmul.f32 %v957, %v959
    %v961 = vadd.f32 %v957, %v960
    %vm962 = vweird.f32 %v631
    %vm963 = vweird.f32 %v957
    %vm964 = vmor %vm962, %vm963
    %v965 = vsel %vm964, %v957, %v961
    %v966 = vand.u32 2147483647, %v631
    %vm967 = vcmp.eq.f32.partialorder %v966, 8.507059e+37
    %v968 = vand.u32 %v631, 2147483648
    %v969 = vor.u32 1.1754944e-38, %v968
    %v970 = vsel %vm967, %v969, %v965
    %v971 = vmul.f32 1.0, %v970
    %v972 = vrcp.pop %v632
    %v973 = vmul.f32 %v632, %v972
    %v974 = vsub.f32 1.0, %v973
    %v975 = vmul.f32 %v972, %v974
    %v976 = vadd.f32 %v972, %v975
    %vm977 = vweird.f32 %v632
    %vm978 = vweird.f32 %v972
    %vm979 = vmor %vm977, %vm978
    %v980 = vsel %vm979, %v972, %v976
    %v981 = vand.u32 2147483647, %v632
    %vm982 = vcmp.eq.f32.partialorder %v981, 8.507059e+37
    %v983 = vand.u32 %v632, 2147483648
    %v984 = vor.u32 1.1754944e-38, %v983
    %v985 = vsel %vm982, %v984, %v980
    %v986 = vmul.f32 1.0, %v985
    %v987 = vrcp.pop %v633
    %v988 = vmul.f32 %v633, %v987
    %v989 = vsub.f32 1.0, %v988
    %v990 = vmul.f32 %v987, %v989
    %v991 = vadd.f32 %v987, %v990
    %vm992 = vweird.f32 %v633
    %vm993 = vweird.f32 %v987
    %vm994 = vmor %vm992, %vm993
    %v995 = vsel %vm994, %v987, %v991
    %v996 = vand.u32 2147483647, %v633
    %vm997 = vcmp.eq.f32.partialorder %v996, 8.507059e+37
    %v998 = vand.u32 %v633, 2147483648
    %v999 = vor.u32 1.1754944e-38, %v998
    %v1000 = vsel %vm997, %v999, %v995
    %v1001 = vmul.f32 1.0, %v1000
    %v1002 = vrcp.pop %v634
    %v1003 = vmul.f32 %v634, %v1002
    %v1004 = vsub.f32 1.0, %v1003
    %v1005 = vmul.f32 %v1002, %v1004
    %v1006 = vadd.f32 %v1002, %v1005
    %vm1007 = vweird.f32 %v634
    %vm1008 = vweird.f32 %v1002
    %vm1009 = vmor %vm1007, %vm1008
    %v1010 = vsel %vm1009, %v1002, %v1006
    %v1011 = vand.u32 2147483647, %v634
    %vm1012 = vcmp.eq.f32.partialorder %v1011, 8.507059e+37
    %v1013 = vand.u32 %v634, 2147483648
    %v1014 = vor.u32 1.1754944e-38, %v1013
    %v1015 = vsel %vm1012, %v1014, %v1010
    %v1016 = vmul.f32 1.0, %v1015
    %v1017 = vrcp.pop %v635
    %v1018 = vmul.f32 %v635, %v1017
    %v1019 = vsub.f32 1.0, %v1018
    %v1020 = vmul.f32 %v1017, %v1019
    %v1021 = vadd.f32 %v1017, %v1020
    %vm1022 = vweird.f32 %v635
    %vm1023 = vweird.f32 %v1017
    %vm1024 = vmor %vm1022, %vm1023
    %v1025 = vsel %vm1024, %v1017, %v1021
    %v1026 = vand.u32 2147483647, %v635
    %vm1027 = vcmp.eq.f32.partialorder %v1026, 8.507059e+37
    %v1028 = vand.u32 %v635, 2147483648
    %v1029 = vor.u32 1.1754944e-38, %v1028
    %v1030 = vsel %vm1027, %v1029, %v1025
    %v1031 = vmul.f32 1.0, %v1030
    %v1032 = vrcp.pop %v636
    %v1033 = vmul.f32 %v636, %v1032
    %v1034 = vsub.f32 1.0, %v1033
    %v1035 = vmul.f32 %v1032, %v1034
    %v1036 = vadd.f32 %v1032, %v1035
    %vm1037 = vweird.f32 %v636
    %vm1038 = vweird.f32 %v1032
    %vm1039 = vmor %vm1037, %vm1038
    %v1040 = vsel %vm1039, %v1032, %v1036
    %v1041 = vand.u32 2147483647, %v636
    %vm1042 = vcmp.eq.f32.partialorder %v1041, 8.507059e+37
    %v1043 = vand.u32 %v636, 2147483648
    %v1044 = vor.u32 1.1754944e-38, %v1043
    %v1045 = vsel %vm1042, %v1044, %v1040
    %v1046 = vmul.f32 1.0, %v1045
    %v1047 = vrcp.pop %v637
    %v1048 = vmul.f32 %v637, %v1047
    %v1049 = vsub.f32 1.0, %v1048
    %v1050 = vmul.f32 %v1047, %v1049
    %v1051 = vadd.f32 %v1047, %v1050
    %vm1052 = vweird.f32 %v637
    %vm1053 = vweird.f32 %v1047
    %vm1054 = vmor %vm1052, %vm1053
    %v1055 = vsel %vm1054, %v1047, %v1051
    %v1056 = vand.u32 2147483647, %v637
    %vm1057 = vcmp.eq.f32.partialorder %v1056, 8.507059e+37
    %v1058 = vand.u32 %v637, 2147483648
    %v1059 = vor.u32 1.1754944e-38, %v1058
    %v1060 = vsel %vm1057, %v1059, %v1055
    %v1061 = vmul.f32 1.0, %v1060
    %v1062 = vrcp.pop %v638
    %v1063 = vmul.f32 %v638, %v1062
    %v1064 = vsub.f32 1.0, %v1063
    %v1065 = vmul.f32 %v1062, %v1064
    %v1066 = vadd.f32 %v1062, %v1065
    %vm1067 = vweird.f32 %v638
    %vm1068 = vweird.f32 %v1062
    %vm1069 = vmor %vm1067, %vm1068
    %v1070 = vsel %vm1069, %v1062, %v1066
    %v1071 = vand.u32 2147483647, %v638
    %vm1072 = vcmp.eq.f32.partialorder %v1071, 8.507059e+37
    %v1073 = vand.u32 %v638, 2147483648
    %v1074 = vor.u32 1.1754944e-38, %v1073
    %v1075 = vsel %vm1072, %v1074, %v1070
    %v1076 = vmul.f32 1.0, %v1075
    %v1077 = vrcp.pop %v639
    %v1078 = vmul.f32 %v639, %v1077
    %v1079 = vsub.f32 1.0, %v1078
    %v1080 = vmul.f32 %v1077, %v1079
    %v1081 = vadd.f32 %v1077, %v1080
    %vm1082 = vweird.f32 %v639
    %vm1083 = vweird.f32 %v1077
    %vm1084 = vmor %vm1082, %vm1083
    %v1085 = vsel %vm1084, %v1077, %v1081
    %v1086 = vand.u32 2147483647, %v639
    %vm1087 = vcmp.eq.f32.partialorder %v1086, 8.507059e+37
    %v1088 = vand.u32 %v639, 2147483648
    %v1089 = vor.u32 1.1754944e-38, %v1088
    %v1090 = vsel %vm1087, %v1089, %v1085
    %v1091 = vmul.f32 1.0, %v1090
    %v1092 = vrcp.pop %v640
    %v1093 = vmul.f32 %v640, %v1092
    %v1094 = vsub.f32 1.0, %v1093
    %v1095 = vmul.f32 %v1092, %v1094
    %v1096 = vadd.f32 %v1092, %v1095
    %vm1097 = vweird.f32 %v640
    %vm1098 = vweird.f32 %v1092
    %vm1099 = vmor %vm1097, %vm1098
    %v1100 = vsel %vm1099, %v1092, %v1096
    %v1101 = vand.u32 2147483647, %v640
    %vm1102 = vcmp.eq.f32.partialorder %v1101, 8.507059e+37
    %v1103 = vand.u32 %v640, 2147483648
    %v1104 = vor.u32 1.1754944e-38, %v1103
    %v1105 = vsel %vm1102, %v1104, %v1100
    %v1106 = vmul.f32 1.0, %v1105
    %v1107 = vrcp.pop %v641
    %v1108 = vmul.f32 %v641, %v1107
    %v1109 = vsub.f32 1.0, %v1108
    %v1110 = vmul.f32 %v1107, %v1109
    %v1111 = vadd.f32 %v1107, %v1110
    %vm1112 = vweird.f32 %v641
    %vm1113 = vweird.f32 %v1107
    %vm1114 = vmor %vm1112, %vm1113
    %v1115 = vsel %vm1114, %v1107, %v1111
    %v1116 = vand.u32 2147483647, %v641
    %vm1117 = vcmp.eq.f32.partialorder %v1116, 8.507059e+37
    %v1118 = vand.u32 %v641, 2147483648
    %v1119 = vor.u32 1.1754944e-38, %v1118
    %v1120 = vsel %vm1117, %v1119, %v1115
    %v1121 = vmul.f32 1.0, %v1120
    %v1122 = vmul.f32 %v328, %v656
    %v1123 = vmul.f32 %v377, %v671
    %v1124 = vmul.f32 %v330, %v686
    %v1125 = vmul.f32 %v379, %v701
    %v1126 = vmul.f32 %v333, %v716
    %v1127 = vmul.f32 %v382, %v731
    %v1128 = vmul.f32 %v335, %v746
    %v1129 = vmul.f32 %v384, %v761
    %v1130 = vmul.f32 %v338, %v776
    %v1131 = vmul.f32 %v387, %v791
    %v1132 = vmul.f32 %v340, %v806
    %v1133 = vmul.f32 %v389, %v821
    %v1134 = vmul.f32 %v343, %v836
    %v1135 = vmul.f32 %v392, %v851
    %v1136 = vmul.f32 %v345, %v866
    %v1137 = vmul.f32 %v394, %v881
    %v1138 = vmul.f32 %v348, %v896
    %v1139 = vmul.f32 %v397, %v911
    %v1140 = vmul.f32 %v350, %v926
    %v1141 = vmul.f32 %v399, %v941
    %v1142 = vmul.f32 %v353, %v956
    %v1143 = vmul.f32 %v402, %v971
    %v1144 = vmul.f32 %v355, %v986
    %v1145 = vmul.f32 %v404, %v1001
    %v1146 = vmul.f32 %v358, %v1016
    %v1147 = vmul.f32 %v407, %v1031
    %v1148 = vmul.f32 %v360, %v1046
    %v1149 = vmul.f32 %v409, %v1061
    %v1150 = vmul.f32 %v363, %v1076
    %v1151 = vmul.f32 %v412, %v1091
    %v1152 = vmul.f32 %v365, %v1106
    %v1153 = vmul.f32 %v414, %v1121
    %v1154 = vmul.f32 %v1122, %v426
    %v1155 = vmul.f32 %v1123, %v475
    %v1156 = vmul.f32 %v1124, %v428
    %v1157 = vmul.f32 %v1125, %v477
    %v1158 = vmul.f32 %v1126, %v431
    %v1159 = vmul.f32 %v1127, %v480
    %v1160 = vmul.f32 %v1128, %v433
    %v1161 = vmul.f32 %v1129, %v482
    %v1162 = vmul.f32 %v1130, %v436
    %v1163 = vmul.f32 %v1131, %v485
    %v1164 = vmul.f32 %v1132, %v438
    %v1165 = vmul.f32 %v1133, %v487
    %v1166 = vmul.f32 %v1134, %v441
    %v1167 = vmul.f32 %v1135, %v490
    %v1168 = vmul.f32 %v1136, %v443
    %v1169 = vmul.f32 %v1137, %v492
    %v1170 = vmul.f32 %v1138, %v446
    %v1171 = vmul.f32 %v1139, %v495
    %v1172 = vmul.f32 %v1140, %v448
    %v1173 = vmul.f32 %v1141, %v497
    %v1174 = vmul.f32 %v1142, %v451
    %v1175 = vmul.f32 %v1143, %v500
    %v1176 = vmul.f32 %v1144, %v453
    %v1177 = vmul.f32 %v1145, %v502
    %v1178 = vmul.f32 %v1146, %v456
    %v1179 = vmul.f32 %v1147, %v505
    %v1180 = vmul.f32 %v1148, %v458
    %v1181 = vmul.f32 %v1149, %v507
    %v1182 = vmul.f32 %v1150, %v461
    %v1183 = vmul.f32 %v1151, %v510
    %v1184 = vmul.f32 %v1152, %v463
    %v1185 = vmul.f32 %v1153, %v512
    %v1186 = vpack.c.bf16 %v1156, %v1154
    %v1187 = vpack.c.bf16 %v1157, %v1155
    %v1188 = vpack.c.bf16 %v1160, %v1158
    %v1189 = vpack.c.bf16 %v1161, %v1159
    %v1190 = vpack.c.bf16 %v1164, %v1162
    %v1191 = vpack.c.bf16 %v1165, %v1163
    %v1192 = vpack.c.bf16 %v1168, %v1166
    %v1193 = vpack.c.bf16 %v1169, %v1167
    %v1194 = vpack.c.bf16 %v1172, %v1170
    %v1195 = vpack.c.bf16 %v1173, %v1171
    %v1196 = vpack.c.bf16 %v1176, %v1174
    %v1197 = vpack.c.bf16 %v1177, %v1175
    %v1198 = vpack.c.bf16 %v1180, %v1178
    %v1199 = vpack.c.bf16 %v1181, %v1179
    %v1200 = vpack.c.bf16 %v1184, %v1182
    %v1201 = vpack.c.bf16 %v1185, %v1183
    %v1202 = vld [vmem:[#allocation7] sm:$0xf]
    %v1203 = vld [vmem:[#allocation7 + $0x4] sm:$0xf]
    %v1204 = vld [vmem:[#allocation7 + $0x8] sm:$0xf]
    %v1205 = vld [vmem:[#allocation7 + $0xc] sm:$0xf]
    %v1206 = vld [vmem:[#allocation7 + $0x10] sm:$0xf]
    %v1207 = vld [vmem:[#allocation7 + $0x14] sm:$0xf]
    %v1208 = vld [vmem:[#allocation7 + $0x18] sm:$0xf]
    %v1209 = vld [vmem:[#allocation7 + $0x1c] sm:$0xf]
    %v1210 = vld [vmem:[#allocation7 + $0x20] sm:$0xf]
    %v1211 = vld [vmem:[#allocation7 + $0x24] sm:$0xf]
    %v1212 = vld [vmem:[#allocation7 + $0x28] sm:$0xf]
    %v1213 = vld [vmem:[#allocation7 + $0x2c] sm:$0xf]
    %v1214 = vld [vmem:[#allocation7 + $0x30] sm:$0xf]
    %v1215 = vld [vmem:[#allocation7 + $0x34] sm:$0xf]
    %v1216 = vld [vmem:[#allocation7 + $0x38] sm:$0xf]
    %v1217 = vld [vmem:[#allocation7 + $0x3c] sm:$0xf]
    %v1218 = vld [vmem:[#allocation7 + $0x40] sm:$0xf]
    %v1219 = vld [vmem:[#allocation7 + $0x44] sm:$0xf]
    %v1220 = vld [vmem:[#allocation7 + $0x48] sm:$0xf]
    %v1221 = vld [vmem:[#allocation7 + $0x4c] sm:$0xf]
    %v1222 = vld [vmem:[#allocation7 + $0x50] sm:$0xf]
    %v1223 = vld [vmem:[#allocation7 + $0x54] sm:$0xf]
    %v1224 = vld [vmem:[#allocation7 + $0x58] sm:$0xf]
    %v1225 = vld [vmem:[#allocation7 + $0x5c] sm:$0xf]
    %v1226 = vld [vmem:[#allocation7 + $0x60] sm:$0xf]
    %v1227 = vld [vmem:[#allocation7 + $0x64] sm:$0xf]
    %v1228 = vld [vmem:[#allocation7 + $0x68] sm:$0xf]
    %v1229 = vld [vmem:[#allocation7 + $0x6c] sm:$0xf]
    %v1230 = vld [vmem:[#allocation7 + $0x70] sm:$0xf]
    %v1231 = vld [vmem:[#allocation7 + $0x74] sm:$0xf]
    %v1232 = vld [vmem:[#allocation7 + $0x78] sm:$0xf]
    %v1233 = vld [vmem:[#allocation7 + $0x7c] sm:$0xf]
    %v1266 = vunpack.c.l.b16 %v1202
    %v1267 = vunpack.c.l.b16 %v1203
    %v1268 = vunpack.c.l.b16 %v1204
    %v1269 = vunpack.c.l.b16 %v1205
    %v1270 = vunpack.c.l.b16 %v1206
    %v1271 = vunpack.c.l.b16 %v1207
    %v1272 = vunpack.c.l.b16 %v1208
    %v1273 = vunpack.c.l.b16 %v1209
    %v1274 = vunpack.c.l.b16 %v1210
    %v1275 = vunpack.c.l.b16 %v1211
    %v1276 = vunpack.c.l.b16 %v1212
    %v1277 = vunpack.c.l.b16 %v1213
    %v1278 = vunpack.c.l.b16 %v1214
    %v1279 = vunpack.c.l.b16 %v1215
    %v1280 = vunpack.c.l.b16 %v1216
    %v1281 = vunpack.c.l.b16 %v1217
    %v1282 = vunpack.c.l.b16 %v1218
    %v1283 = vunpack.c.l.b16 %v1219
    %v1284 = vunpack.c.l.b16 %v1220
    %v1285 = vunpack.c.l.b16 %v1221
    %v1286 = vunpack.c.l.b16 %v1222
    %v1287 = vunpack.c.l.b16 %v1223
    %v1288 = vunpack.c.l.b16 %v1224
    %v1289 = vunpack.c.l.b16 %v1225
    %v1290 = vunpack.c.l.b16 %v1226
    %v1291 = vunpack.c.l.b16 %v1227
    %v1292 = vunpack.c.l.b16 %v1228
    %v1293 = vunpack.c.l.b16 %v1229
    %v1294 = vunpack.c.l.b16 %v1230
    %v1295 = vunpack.c.l.b16 %v1231
    %v1296 = vunpack.c.l.b16 %v1232
    %v1297 = vunpack.c.l.b16 %v1233
    %v1298 = vpack.c.b16 %v1267, %v1266
    %v1299 = vpack.c.b16 %v1269, %v1268
    %v1300 = vpack.c.b16 %v1271, %v1270
    %v1301 = vpack.c.b16 %v1273, %v1272
    %v1302 = vpack.c.b16 %v1275, %v1274
    %v1303 = vpack.c.b16 %v1277, %v1276
    %v1304 = vpack.c.b16 %v1279, %v1278
    %v1305 = vpack.c.b16 %v1281, %v1280
    %v1306 = vpack.c.b16 %v1283, %v1282
    %v1307 = vpack.c.b16 %v1285, %v1284
    %v1308 = vpack.c.b16 %v1287, %v1286
    %v1309 = vpack.c.b16 %v1289, %v1288
    %v1310 = vpack.c.b16 %v1291, %v1290
    %v1311 = vpack.c.b16 %v1293, %v1292
    %v1312 = vpack.c.b16 %v1295, %v1294
    %v1313 = vpack.c.b16 %v1297, %v1296
    %1330 = vmatpush.bf16.msra.mxu0 %v1305
    %1331 = vmatpush.bf16.msra.mxu0 %v1304
    %1332 = vmatpush.bf16.msra.mxu0 %v1303
    %1333 = vmatpush.bf16.msra.mxu0 %v1302
    %1334 = vmatpush.bf16.msra.mxu0 %v1301
    %1335 = vmatpush.bf16.msra.mxu0 %v1300
    %1336 = vmatpush.bf16.msra.mxu0 %v1299
    %1337 = vmatpush.bf16.msra.mxu0 %v1298
    %1338 = vmatmul.bf16.gmra.mxu0 %v1186
    %v1339 = vpop.f32.mrf.mxu0
    %v1340 = vadd.f32 0.0, %v1339
    %v1341 = vpop.f32.mrf.mxu0
    %v1342 = vadd.f32 0.0, %v1341
    %1343 = vmatmul.bf16.gmra.mxu0 %v1188
    %v1344 = vpop.f32.mrf.mxu0
    %v1345 = vadd.f32 0.0, %v1344
    %v1346 = vpop.f32.mrf.mxu0
    %v1347 = vadd.f32 0.0, %v1346
    %1348 = vmatmul.bf16.gmra.mxu0 %v1190
    %v1349 = vpop.f32.mrf.mxu0
    %v1350 = vadd.f32 0.0, %v1349
    %v1351 = vpop.f32.mrf.mxu0
    %v1352 = vadd.f32 0.0, %v1351
    %1353 = vmatmul.bf16.gmra.mxu0 %v1192
    %v1354 = vpop.f32.mrf.mxu0
    %v1355 = vadd.f32 0.0, %v1354
    %v1356 = vpop.f32.mrf.mxu0
    %v1357 = vadd.f32 0.0, %v1356
    %1358 = vmatmul.bf16.gmra.mxu0 %v1194
    %v1359 = vpop.f32.mrf.mxu0
    %v1360 = vadd.f32 0.0, %v1359
    %v1361 = vpop.f32.mrf.mxu0
    %v1362 = vadd.f32 0.0, %v1361
    %1363 = vmatmul.bf16.gmra.mxu0 %v1196
    %v1364 = vpop.f32.mrf.mxu0
    %v1365 = vadd.f32 0.0, %v1364
    %v1366 = vpop.f32.mrf.mxu0
    %v1367 = vadd.f32 0.0, %v1366
    %1368 = vmatmul.bf16.gmra.mxu0 %v1198
    %v1369 = vpop.f32.mrf.mxu0
    %v1370 = vadd.f32 0.0, %v1369
    %v1371 = vpop.f32.mrf.mxu0
    %v1372 = vadd.f32 0.0, %v1371
    %1373 = vmatmul.bf16.gmra.mxu0 %v1200
    %v1374 = vpop.f32.mrf.mxu0
    %v1375 = vadd.f32 0.0, %v1374
    %v1376 = vpop.f32.mrf.mxu0
    %v1377 = vadd.f32 0.0, %v1376
    %1378 = vdwg.mxu0
    %1379 = vmatpush.bf16.msra.mxu0 %v1313
    %1380 = vmatpush.bf16.msra.mxu0 %v1312
    %1381 = vmatpush.bf16.msra.mxu0 %v1311
    %1382 = vmatpush.bf16.msra.mxu0 %v1310
    %1383 = vmatpush.bf16.msra.mxu0 %v1309
    %1384 = vmatpush.bf16.msra.mxu0 %v1308
    %1385 = vmatpush.bf16.msra.mxu0 %v1307
    %1386 = vmatpush.bf16.msra.mxu0 %v1306
    %1387 = vmatmul.bf16.gmra.mxu0 %v1187
    %v1388 = vpop.f32.mrf.mxu0
    %v1389 = vadd.f32 %v1340, %v1388
    %v1390 = vpop.f32.mrf.mxu0
    %v1391 = vadd.f32 %v1342, %v1390
    %1392 = vmatmul.bf16.gmra.mxu0 %v1189
    %v1393 = vpop.f32.mrf.mxu0
    %v1394 = vadd.f32 %v1345, %v1393
    %v1395 = vpop.f32.mrf.mxu0
    %v1396 = vadd.f32 %v1347, %v1395
    %1397 = vmatmul.bf16.gmra.mxu0 %v1191
    %v1398 = vpop.f32.mrf.mxu0
    %v1399 = vadd.f32 %v1350, %v1398
    %v1400 = vpop.f32.mrf.mxu0
    %v1401 = vadd.f32 %v1352, %v1400
    %1402 = vmatmul.bf16.gmra.mxu0 %v1193
    %v1403 = vpop.f32.mrf.mxu0
    %v1404 = vadd.f32 %v1355, %v1403
    %v1405 = vpop.f32.mrf.mxu0
    %v1406 = vadd.f32 %v1357, %v1405
    %1407 = vmatmul.bf16.gmra.mxu0 %v1195
    %v1408 = vpop.f32.mrf.mxu0
    %v1409 = vadd.f32 %v1360, %v1408
    %v1410 = vpop.f32.mrf.mxu0
    %v1411 = vadd.f32 %v1362, %v1410
    %1412 = vmatmul.bf16.gmra.mxu0 %v1197
    %v1413 = vpop.f32.mrf.mxu0
    %v1414 = vadd.f32 %v1365, %v1413
    %v1415 = vpop.f32.mrf.mxu0
    %v1416 = vadd.f32 %v1367, %v1415
    %1417 = vmatmul.bf16.gmra.mxu0 %v1199
    %v1418 = vpop.f32.mrf.mxu0
    %v1419 = vadd.f32 %v1370, %v1418
    %v1420 = vpop.f32.mrf.mxu0
    %v1421 = vadd.f32 %v1372, %v1420
    %1422 = vmatmul.bf16.gmra.mxu0 %v1201
    %v1423 = vpop.f32.mrf.mxu0
    %v1424 = vadd.f32 %v1375, %v1423
    %v1425 = vpop.f32.mrf.mxu0
    %v1426 = vadd.f32 %v1377, %v1425
    %1427 = vdwg.mxu0
    %1428 = vst [vmem:[#allocation8] sm:$0xff] %v1389
    %1429 = vst [vmem:[#allocation8 + $0x8] sm:$0xff] %v1391
    %1430 = vst [vmem:[#allocation8 + $0x10] sm:$0xff] %v1394
    %1431 = vst [vmem:[#allocation8 + $0x18] sm:$0xff] %v1396
    %1432 = vst [vmem:[#allocation8 + $0x20] sm:$0xff] %v1399
    %1433 = vst [vmem:[#allocation8 + $0x28] sm:$0xff] %v1401
    %1434 = vst [vmem:[#allocation8 + $0x30] sm:$0xff] %v1404
    %1435 = vst [vmem:[#allocation8 + $0x38] sm:$0xff] %v1406
    %1436 = vst [vmem:[#allocation8 + $0x40] sm:$0xff] %v1409
    %1437 = vst [vmem:[#allocation8 + $0x48] sm:$0xff] %v1411
    %1438 = vst [vmem:[#allocation8 + $0x50] sm:$0xff] %v1414
    %1439 = vst [vmem:[#allocation8 + $0x58] sm:$0xff] %v1416
    %1440 = vst [vmem:[#allocation8 + $0x60] sm:$0xff] %v1419
    %1441 = vst [vmem:[#allocation8 + $0x68] sm:$0xff] %v1421
    %1442 = vst [vmem:[#allocation8 + $0x70] sm:$0xff] %v1424
    %1443 = vst [vmem:[#allocation8 + $0x78] sm:$0xff] %v1426
    // Predicated region
    $region26: #{tpu_custom_call.1} parent=1 // pred_check
      _
    $region27: #{tpu_custom_call.1} parent=1 // pred_check_branch
      %1445 = sbr.rel (0) target = $region29
    $region28: #{tpu_custom_call.1} parent=1 // pred_region
      %1447 = vsyncadd [#allocation4], 0
      %s1448 = sshll.u32 [#allocation8], 4
      %s1449 = int_to_ptr.vmem [resolvable:$true] %s1448
      %s1450 = sshll.u32 %s3, 4
      %s1451 = int_to_ptr.hbm [resolvable:$true] %s1450
      %1456 = dma.vmem_to_hbm [thread:$0]  %s1449, 2048, %s1451, [#allocation4], 128, 128, 8
    $region29: #{tpu_custom_call.1} parent=1 // pred_fallthru
      _
    // Predicated region
    $region30: #{tpu_custom_call.1} parent=1 // pred_check
      _
    $region31: #{tpu_custom_call.1} parent=1 // pred_check_branch
      %1458 = sbr.rel (0) target = $region33
    $region32: #{tpu_custom_call.1} parent=1 // pred_region
      %1460 = dma.done [#allocation4], 2048
    $region33: #{tpu_custom_call.1} parent=1 // pred_fallthru
      _
    %1461 = vsyncpa [#allocation3], 1
    %1462 = vsyncpa [#allocation6], 1
    %1463 = vsyncpa [#allocation4], 1

</llo_original>
